<compile_context>
chip_gen: v7x
topology: tpu7x:2x2x1
jax: 0.10.0
libtpu: 0.0.40
codegen_flags: <defaults>
</compile_context>

<pallas_src>
import jax
import jax.numpy as jnp
from jax.experimental import pallas as pl
from jax.experimental.pallas import tpu as pltpu


NUM_MODELS = 5          # textcnn, lstm, gru, lstmcnn, grucnn
SE_HID = 3              # se_module hidden width: Linear(num_models, 3)
FEAT_DIM = 256          # featrue_dim
HIDDEN = 1024           # self.linear: Linear(num_models * featrue_dim, 1024)
BATCH = 8
SEQ = 8
VOCAB = 100
EMB = 32


def se_ensemble_kernel(feats_ref, wse1_ref, wse2_ref, wf_ref, bf_ref, out_ref):
    """Squeeze-excitation ensemble head, one batch tile per grid step.

    feats_ref : [M, TB, F]   per-model features (model axis leading)
    wse1_ref  : [M, SE_HID]  se_module Linear(M, 3, bias=False) weight (transposed)
    wse2_ref  : [SE_HID, M]  se_module Linear(3, M, bias=False) weight (transposed)
    wf_ref    : [M, F]       fused head weight  (= (W1 @ W2).reshape(M, F))
    bf_ref    : [1, 1]       fused head bias    (= b1 @ W2 + b2)
    out_ref   : [TB, 1]
    """
    tb = out_ref.shape[0]
    feat_dim = feats_ref.shape[-1]

    wse1 = wse1_ref[...]                       # [M, SE_HID]
    wse2 = wse2_ref[...]                       # [SE_HID, M]
    wf = wf_ref[...]                           # [M, F]

    # ---- squeeze (mean over F) + fused per-model weighted sums -----------
    # Both are lane reductions over the same per-model [TB, F] tile; compute
    # them from a single load of each model's features.
    inv_f = 1.0 / float(feat_dim)
    pool_cols = []                             # each [TB, 1]
    wsum_cols = []                             # each [TB, 1]
    for m in range(NUM_MODELS):
        fm = feats_ref[m]                      # [TB, F]
        pool_cols.append(jnp.sum(fm, axis=-1, keepdims=True) * inv_f)
        wsum_cols.append(
            jnp.sum(fm * wf[m:m + 1, :], axis=-1, keepdims=True))

    # ---- excitation: Linear(M,3) -> Swish -> Linear(3,M) -> Sigmoid -------
    # Unrolled VPU broadcast multiply-adds (no masked N=3 / N=5 MXU pushes).
    h = jnp.zeros((tb, SE_HID), dtype=jnp.float32)
    for m in range(NUM_MODELS):
        h = h + pool_cols[m] * wse1[m:m + 1, :]              # [TB,1]*[1,3]
    h = h * jax.nn.sigmoid(h)                                # Swish
    logits = jnp.zeros((tb, NUM_MODELS), dtype=jnp.float32)
    for j in range(SE_HID):
        logits = logits + h[:, j:j + 1] * wse2[j:j + 1, :]   # [TB,1]*[1,M]
    se = jax.nn.sigmoid(logits)                              # [TB, M]

    # ---- fused head: out = sum_m se[:, m] * (feats_m . wf_m) + bf ---------
    acc = jnp.zeros((tb, 1), dtype=jnp.float32)
    for m in range(NUM_MODELS):
        acc = acc + se[:, m:m + 1] * wsum_cols[m]
    out_ref[...] = (acc + bf_ref[...]).astype(out_ref.dtype)


def ensemble_se_head(feats_mbf, wse1, wse2, wf, bf, *, tb=None):
    """Pallas wrapper. feats_mbf is [M, B, F] (model axis leading)."""
    M, B, F = feats_mbf.shape
    if tb is None:
        tb = B if B <= 128 else 128
    assert B % tb == 0, "batch must be divisible by the batch tile"
    grid = (B // tb,)

    return pl.pallas_call(
        se_ensemble_kernel,
        out_shape=jax.ShapeDtypeStruct((B, 1), jnp.float32),
        grid_spec=pltpu.PrefetchScalarGridSpec(
            num_scalar_prefetch=0,
            grid=grid,
            in_specs=[
                pl.BlockSpec((M, tb, F), lambda i: (0, i, 0)),    # feats
                pl.BlockSpec((M, SE_HID), lambda i: (0, 0)),      # SE W1
                pl.BlockSpec((SE_HID, M), lambda i: (0, 0)),      # SE W2
                pl.BlockSpec((M, F), lambda i: (0, 0)),           # fused head W
                pl.BlockSpec((1, 1), lambda i: (0, 0)),           # fused head b
            ],
            out_specs=pl.BlockSpec((tb, 1), lambda i: (i, 0)),
        ),
        compiler_params=pltpu.CompilerParams(
            dimension_semantics=("parallel",)),
    )(feats_mbf, wse1, wse2, wf, bf)


# ---------------------------------------------------------------------------
# Plain-JAX glue: deterministic parameters + stand-in sub-model features.
# ---------------------------------------------------------------------------
def init_params(key):
    ks = jax.random.split(key, 10)
    scale = 0.02
    embedding = scale * jax.random.normal(ks[0], (VOCAB, EMB), jnp.float32)
    # per-model stand-in feature projections
    model_proj = scale * jax.random.normal(
        ks[1], (NUM_MODELS, EMB, FEAT_DIM), jnp.float32)
    model_bias = scale * jax.random.normal(
        ks[2], (NUM_MODELS, FEAT_DIM), jnp.float32)

    # se_module: Linear(M, 3, bias=False) / Linear(3, M, bias=False), transposed
    w_se1 = jax.random.normal(ks[3], (NUM_MODELS, SE_HID), jnp.float32)
    w_se2 = jax.random.normal(ks[4], (SE_HID, NUM_MODELS), jnp.float32)

    # linear: Linear(M*F, 1024), stored transposed
    w1 = scale * jax.random.normal(
        ks[5], (NUM_MODELS * FEAT_DIM, HIDDEN), jnp.float32)
    b1 = scale * jax.random.normal(ks[6], (1, HIDDEN), jnp.float32)

    # classifier: Linear(1024, 1), stored transposed
    w2 = scale * jax.random.normal(ks[7], (HIDDEN, 1), jnp.float32)
    b2 = scale * jax.random.normal(ks[8], (1, 1), jnp.float32)

    return dict(embedding=embedding, model_proj=model_proj,
                model_bias=model_bias, w_se1=w_se1, w_se2=w_se2,
                w1=w1, b1=b1, w2=w2, b2=b2)


def submodel_features(x_tokens, params):
    """Stand-in for the 5 frozen sub-models: embed, mean-pool, per-model linear.

    Returns feats [B, M, F] (= torch.stack([m(x)[0] for m in models], -2)).
    """
    emb = params["embedding"][x_tokens]          # [B, S, EMB]
    pooled = jnp.mean(emb, axis=1)               # [B, EMB]
    feats = jnp.einsum("be,mef->bmf", pooled, params["model_proj"])
    feats = jnp.tanh(feats + params["model_bias"][None, :, :])
    return feats.astype(jnp.float32)


def reference_forward(feats_bmf, params):
    """Pure-JAX reference of the SE ensemble head (unfused)."""
    B = feats_bmf.shape[0]
    pool = jnp.mean(feats_bmf, axis=-1)                      # adaptive_avg_pool1d -> [B, M]
    h = pool @ params["w_se1"]
    h = h * jax.nn.sigmoid(h)                                # Swish
    se = jax.nn.sigmoid(h @ params["w_se2"])                 # [B, M]
    scaled = se[:, :, None] * feats_bmf                      # [B, M, F]
    flat = scaled.reshape(B, NUM_MODELS * FEAT_DIM)
    hid = flat @ params["w1"] + params["b1"]                 # Dropout = identity
    return hid @ params["w2"] + params["b2"]                 # [B, 1]


if __name__ == "__main__":
    key = jax.random.PRNGKey(0)
    k_param, k_x = jax.random.split(key)
    params = init_params(k_param)

    # input token ids, analogous to the PyTorch module's `x`
    x = jax.random.randint(k_x, (BATCH, SEQ), 0, VOCAB, dtype=jnp.int32)

    feats_bmf = submodel_features(x, params)                 # [B, M, F]
    feats_mbf = jnp.transpose(feats_bmf, (1, 0, 2))          # [M, B, F] for the kernel

    # Fuse linear -> (dropout = identity) -> classifier once in the wrapper.
    wf = (params["w1"] @ params["w2"]).reshape(NUM_MODELS, FEAT_DIM)   # [M, F]
    bf = params["b1"] @ params["w2"] + params["b2"]                    # [1, 1]

    out = ensemble_se_head(feats_mbf, params["w_se1"], params["w_se2"], wf, bf)
    out = jax.block_until_ready(out)

    ref = reference_forward(feats_bmf, params)
    assert out.shape == (BATCH, 1)
    assert jnp.allclose(out, ref, atol=1e-3, rtol=1e-3), "mismatch vs reference"

    print("KERNEL_OK")
</pallas_src>

<mosaic_0001>
module attributes {stable_mosaic.version = 11 : i64} {
  func.func @se_ensemble_kernel(%arg0: i32, %arg1: memref<5x8x256xf32, #tpu.memory_space<vmem>>, %arg2: memref<5x3xf32, #tpu.memory_space<vmem>>, %arg3: memref<3x5xf32, #tpu.memory_space<vmem>>, %arg4: memref<5x256xf32, #tpu.memory_space<vmem>>, %arg5: memref<1x1xf32, #tpu.memory_space<vmem>>, %arg6: memref<8x1xf32, #tpu.memory_space<vmem>>) attributes {dimension_semantics = [#tpu.dimension_semantics<parallel>], iteration_bounds = array<i64: 1>, scalar_prefetch = 0 : i64, scratch_operands = 0 : i64, tpu.core_type = #tpu.core_type<tc>, window_params = [{transform_indices = @transform_0, window_bounds = array<i64: 5, 8, 256>}, {pipeline_mode = #tpu.pipeline_mode<synchronous>, transform_indices = @transform_1, window_bounds = array<i64: 5, 3>}, {pipeline_mode = #tpu.pipeline_mode<synchronous>, transform_indices = @transform_2, window_bounds = array<i64: 3, 5>}, {pipeline_mode = #tpu.pipeline_mode<synchronous>, transform_indices = @transform_3, window_bounds = array<i64: 5, 256>}, {pipeline_mode = #tpu.pipeline_mode<synchronous>, transform_indices = @transform_4, window_bounds = array<i64: 1, 1>}, {transform_indices = @transform_5, window_bounds = array<i64: 8, 1>}]} {
    %c0 = arith.constant 0 : index
    %c0_0 = arith.constant 0 : index
    %0 = vector.load %arg2[%c0, %c0_0] : memref<5x3xf32, #tpu.memory_space<vmem>>, vector<5x3xf32>
    %c0_1 = arith.constant 0 : index
    %c0_2 = arith.constant 0 : index
    %1 = vector.load %arg3[%c0_1, %c0_2] : memref<3x5xf32, #tpu.memory_space<vmem>>, vector<3x5xf32>
    %c0_3 = arith.constant 0 : index
    %c0_4 = arith.constant 0 : index
    %2 = vector.load %arg4[%c0_3, %c0_4] : memref<5x256xf32, #tpu.memory_space<vmem>>, vector<5x256xf32>
    %c0_5 = arith.constant 0 : index
    %c0_6 = arith.constant 0 : index
    %c0_7 = arith.constant 0 : index
    %3 = vector.load %arg1[%c0_5, %c0_6, %c0_7] : memref<5x8x256xf32, #tpu.memory_space<vmem>>, vector<1x8x256xf32>
    %4 = vector.shape_cast %3 : vector<1x8x256xf32> to vector<8x256xf32>
    %cst = arith.constant dense<0.000000e+00> : vector<8xf32>
    %5 = vector.multi_reduction <add>, %4, %cst [1] : vector<8x256xf32> to vector<8xf32>
    %6 = vector.shape_cast %5 : vector<8xf32> to vector<8x1xf32>
    %cst_8 = arith.constant 3.906250e-03 : f32
    %7 = vector.broadcast %cst_8 : f32 to vector<8x1xf32>
    %8 = arith.mulf %6, %7 : vector<8x1xf32>
    %9 = vector.extract_strided_slice %2 {offsets = [0, 0], sizes = [1, 256], strides = [1, 1]} : vector<5x256xf32> to vector<1x256xf32>
    %10 = vector.broadcast %9 : vector<1x256xf32> to vector<8x256xf32>
    %11 = arith.mulf %4, %10 : vector<8x256xf32>
    %cst_9 = arith.constant dense<0.000000e+00> : vector<8xf32>
    %12 = vector.multi_reduction <add>, %11, %cst_9 [1] : vector<8x256xf32> to vector<8xf32>
    %13 = vector.shape_cast %12 : vector<8xf32> to vector<8x1xf32>
    %c1 = arith.constant 1 : index
    %c0_10 = arith.constant 0 : index
    %c0_11 = arith.constant 0 : index
    %14 = vector.load %arg1[%c1, %c0_10, %c0_11] : memref<5x8x256xf32, #tpu.memory_space<vmem>>, vector<1x8x256xf32>
    %15 = vector.shape_cast %14 : vector<1x8x256xf32> to vector<8x256xf32>
    %cst_12 = arith.constant dense<0.000000e+00> : vector<8xf32>
    %16 = vector.multi_reduction <add>, %15, %cst_12 [1] : vector<8x256xf32> to vector<8xf32>
    %17 = vector.shape_cast %16 : vector<8xf32> to vector<8x1xf32>
    %cst_13 = arith.constant 3.906250e-03 : f32
    %18 = vector.broadcast %cst_13 : f32 to vector<8x1xf32>
    %19 = arith.mulf %17, %18 : vector<8x1xf32>
    %20 = vector.extract_strided_slice %2 {offsets = [1, 0], sizes = [1, 256], strides = [1, 1]} : vector<5x256xf32> to vector<1x256xf32>
    %21 = vector.broadcast %20 : vector<1x256xf32> to vector<8x256xf32>
    %22 = arith.mulf %15, %21 : vector<8x256xf32>
    %cst_14 = arith.constant dense<0.000000e+00> : vector<8xf32>
    %23 = vector.multi_reduction <add>, %22, %cst_14 [1] : vector<8x256xf32> to vector<8xf32>
    %24 = vector.shape_cast %23 : vector<8xf32> to vector<8x1xf32>
    %c2 = arith.constant 2 : index
    %c0_15 = arith.constant 0 : index
    %c0_16 = arith.constant 0 : index
    %25 = vector.load %arg1[%c2, %c0_15, %c0_16] : memref<5x8x256xf32, #tpu.memory_space<vmem>>, vector<1x8x256xf32>
    %26 = vector.shape_cast %25 : vector<1x8x256xf32> to vector<8x256xf32>
    %cst_17 = arith.constant dense<0.000000e+00> : vector<8xf32>
    %27 = vector.multi_reduction <add>, %26, %cst_17 [1] : vector<8x256xf32> to vector<8xf32>
    %28 = vector.shape_cast %27 : vector<8xf32> to vector<8x1xf32>
    %cst_18 = arith.constant 3.906250e-03 : f32
    %29 = vector.broadcast %cst_18 : f32 to vector<8x1xf32>
    %30 = arith.mulf %28, %29 : vector<8x1xf32>
    %31 = vector.extract_strided_slice %2 {offsets = [2, 0], sizes = [1, 256], strides = [1, 1]} : vector<5x256xf32> to vector<1x256xf32>
    %32 = vector.broadcast %31 : vector<1x256xf32> to vector<8x256xf32>
    %33 = arith.mulf %26, %32 : vector<8x256xf32>
    %cst_19 = arith.constant dense<0.000000e+00> : vector<8xf32>
    %34 = vector.multi_reduction <add>, %33, %cst_19 [1] : vector<8x256xf32> to vector<8xf32>
    %35 = vector.shape_cast %34 : vector<8xf32> to vector<8x1xf32>
    %c3 = arith.constant 3 : index
    %c0_20 = arith.constant 0 : index
    %c0_21 = arith.constant 0 : index
    %36 = vector.load %arg1[%c3, %c0_20, %c0_21] : memref<5x8x256xf32, #tpu.memory_space<vmem>>, vector<1x8x256xf32>
    %37 = vector.shape_cast %36 : vector<1x8x256xf32> to vector<8x256xf32>
    %cst_22 = arith.constant dense<0.000000e+00> : vector<8xf32>
    %38 = vector.multi_reduction <add>, %37, %cst_22 [1] : vector<8x256xf32> to vector<8xf32>
    %39 = vector.shape_cast %38 : vector<8xf32> to vector<8x1xf32>
    %cst_23 = arith.constant 3.906250e-03 : f32
    %40 = vector.broadcast %cst_23 : f32 to vector<8x1xf32>
    %41 = arith.mulf %39, %40 : vector<8x1xf32>
    %42 = vector.extract_strided_slice %2 {offsets = [3, 0], sizes = [1, 256], strides = [1, 1]} : vector<5x256xf32> to vector<1x256xf32>
    %43 = vector.broadcast %42 : vector<1x256xf32> to vector<8x256xf32>
    %44 = arith.mulf %37, %43 : vector<8x256xf32>
    %cst_24 = arith.constant dense<0.000000e+00> : vector<8xf32>
    %45 = vector.multi_reduction <add>, %44, %cst_24 [1] : vector<8x256xf32> to vector<8xf32>
    %46 = vector.shape_cast %45 : vector<8xf32> to vector<8x1xf32>
    %c4 = arith.constant 4 : index
    %c0_25 = arith.constant 0 : index
    %c0_26 = arith.constant 0 : index
    %47 = vector.load %arg1[%c4, %c0_25, %c0_26] : memref<5x8x256xf32, #tpu.memory_space<vmem>>, vector<1x8x256xf32>
    %48 = vector.shape_cast %47 : vector<1x8x256xf32> to vector<8x256xf32>
    %cst_27 = arith.constant dense<0.000000e+00> : vector<8xf32>
    %49 = vector.multi_reduction <add>, %48, %cst_27 [1] : vector<8x256xf32> to vector<8xf32>
    %50 = vector.shape_cast %49 : vector<8xf32> to vector<8x1xf32>
    %cst_28 = arith.constant 3.906250e-03 : f32
    %51 = vector.broadcast %cst_28 : f32 to vector<8x1xf32>
    %52 = arith.mulf %50, %51 : vector<8x1xf32>
    %53 = vector.extract_strided_slice %2 {offsets = [4, 0], sizes = [1, 256], strides = [1, 1]} : vector<5x256xf32> to vector<1x256xf32>
    %54 = vector.broadcast %53 : vector<1x256xf32> to vector<8x256xf32>
    %55 = arith.mulf %48, %54 : vector<8x256xf32>
    %cst_29 = arith.constant dense<0.000000e+00> : vector<8xf32>
    %56 = vector.multi_reduction <add>, %55, %cst_29 [1] : vector<8x256xf32> to vector<8xf32>
    %57 = vector.shape_cast %56 : vector<8xf32> to vector<8x1xf32>
    %cst_30 = arith.constant 0.000000e+00 : f32
    %58 = vector.broadcast %cst_30 : f32 to vector<8x3xf32>
    %59 = vector.extract_strided_slice %0 {offsets = [0, 0], sizes = [1, 3], strides = [1, 1]} : vector<5x3xf32> to vector<1x3xf32>
    %60 = vector.broadcast %8 : vector<8x1xf32> to vector<8x3xf32>
    %61 = vector.broadcast %59 : vector<1x3xf32> to vector<8x3xf32>
    %62 = arith.mulf %60, %61 : vector<8x3xf32>
    %63 = arith.addf %58, %62 : vector<8x3xf32>
    %64 = vector.extract_strided_slice %0 {offsets = [1, 0], sizes = [1, 3], strides = [1, 1]} : vector<5x3xf32> to vector<1x3xf32>
    %65 = vector.broadcast %19 : vector<8x1xf32> to vector<8x3xf32>
    %66 = vector.broadcast %64 : vector<1x3xf32> to vector<8x3xf32>
    %67 = arith.mulf %65, %66 : vector<8x3xf32>
    %68 = arith.addf %63, %67 : vector<8x3xf32>
    %69 = vector.extract_strided_slice %0 {offsets = [2, 0], sizes = [1, 3], strides = [1, 1]} : vector<5x3xf32> to vector<1x3xf32>
    %70 = vector.broadcast %30 : vector<8x1xf32> to vector<8x3xf32>
    %71 = vector.broadcast %69 : vector<1x3xf32> to vector<8x3xf32>
    %72 = arith.mulf %70, %71 : vector<8x3xf32>
    %73 = arith.addf %68, %72 : vector<8x3xf32>
    %74 = vector.extract_strided_slice %0 {offsets = [3, 0], sizes = [1, 3], strides = [1, 1]} : vector<5x3xf32> to vector<1x3xf32>
    %75 = vector.broadcast %41 : vector<8x1xf32> to vector<8x3xf32>
    %76 = vector.broadcast %74 : vector<1x3xf32> to vector<8x3xf32>
    %77 = arith.mulf %75, %76 : vector<8x3xf32>
    %78 = arith.addf %73, %77 : vector<8x3xf32>
    %79 = vector.extract_strided_slice %0 {offsets = [4, 0], sizes = [1, 3], strides = [1, 1]} : vector<5x3xf32> to vector<1x3xf32>
    %80 = vector.broadcast %52 : vector<8x1xf32> to vector<8x3xf32>
    %81 = vector.broadcast %79 : vector<1x3xf32> to vector<8x3xf32>
    %82 = arith.mulf %80, %81 : vector<8x3xf32>
    %83 = arith.addf %78, %82 : vector<8x3xf32>
    %84 = arith.negf %83 : vector<8x3xf32>
    %85 = math.exp %84 : vector<8x3xf32>
    %cst_31 = arith.constant 1.000000e+00 : f32
    %86 = vector.broadcast %cst_31 : f32 to vector<8x3xf32>
    %87 = arith.addf %86, %85 : vector<8x3xf32>
    %88 = arith.divf %86, %87 : vector<8x3xf32>
    %89 = arith.mulf %83, %88 : vector<8x3xf32>
    %cst_32 = arith.constant 0.000000e+00 : f32
    %90 = vector.broadcast %cst_32 : f32 to vector<8x5xf32>
    %91 = vector.extract_strided_slice %89 {offsets = [0, 0], sizes = [8, 1], strides = [1, 1]} : vector<8x3xf32> to vector<8x1xf32>
    %92 = vector.extract_strided_slice %1 {offsets = [0, 0], sizes = [1, 5], strides = [1, 1]} : vector<3x5xf32> to vector<1x5xf32>
    %93 = vector.broadcast %91 : vector<8x1xf32> to vector<8x5xf32>
    %94 = vector.broadcast %92 : vector<1x5xf32> to vector<8x5xf32>
    %95 = arith.mulf %93, %94 : vector<8x5xf32>
    %96 = arith.addf %90, %95 : vector<8x5xf32>
    %97 = vector.extract_strided_slice %89 {offsets = [0, 1], sizes = [8, 1], strides = [1, 1]} : vector<8x3xf32> to vector<8x1xf32>
    %98 = vector.extract_strided_slice %1 {offsets = [1, 0], sizes = [1, 5], strides = [1, 1]} : vector<3x5xf32> to vector<1x5xf32>
    %99 = vector.broadcast %97 : vector<8x1xf32> to vector<8x5xf32>
    %100 = vector.broadcast %98 : vector<1x5xf32> to vector<8x5xf32>
    %101 = arith.mulf %99, %100 : vector<8x5xf32>
    %102 = arith.addf %96, %101 : vector<8x5xf32>
    %103 = vector.extract_strided_slice %89 {offsets = [0, 2], sizes = [8, 1], strides = [1, 1]} : vector<8x3xf32> to vector<8x1xf32>
    %104 = vector.extract_strided_slice %1 {offsets = [2, 0], sizes = [1, 5], strides = [1, 1]} : vector<3x5xf32> to vector<1x5xf32>
    %105 = vector.broadcast %103 : vector<8x1xf32> to vector<8x5xf32>
    %106 = vector.broadcast %104 : vector<1x5xf32> to vector<8x5xf32>
    %107 = arith.mulf %105, %106 : vector<8x5xf32>
    %108 = arith.addf %102, %107 : vector<8x5xf32>
    %109 = arith.negf %108 : vector<8x5xf32>
    %110 = math.exp %109 : vector<8x5xf32>
    %cst_33 = arith.constant 1.000000e+00 : f32
    %111 = vector.broadcast %cst_33 : f32 to vector<8x5xf32>
    %112 = arith.addf %111, %110 : vector<8x5xf32>
    %113 = arith.divf %111, %112 : vector<8x5xf32>
    %cst_34 = arith.constant 0.000000e+00 : f32
    %114 = vector.broadcast %cst_34 : f32 to vector<8x1xf32>
    %115 = vector.extract_strided_slice %113 {offsets = [0, 0], sizes = [8, 1], strides = [1, 1]} : vector<8x5xf32> to vector<8x1xf32>
    %116 = arith.mulf %115, %13 : vector<8x1xf32>
    %117 = arith.addf %114, %116 : vector<8x1xf32>
    %118 = vector.extract_strided_slice %113 {offsets = [0, 1], sizes = [8, 1], strides = [1, 1]} : vector<8x5xf32> to vector<8x1xf32>
    %119 = arith.mulf %118, %24 : vector<8x1xf32>
    %120 = arith.addf %117, %119 : vector<8x1xf32>
    %121 = vector.extract_strided_slice %113 {offsets = [0, 2], sizes = [8, 1], strides = [1, 1]} : vector<8x5xf32> to vector<8x1xf32>
    %122 = arith.mulf %121, %35 : vector<8x1xf32>
    %123 = arith.addf %120, %122 : vector<8x1xf32>
    %124 = vector.extract_strided_slice %113 {offsets = [0, 3], sizes = [8, 1], strides = [1, 1]} : vector<8x5xf32> to vector<8x1xf32>
    %125 = arith.mulf %124, %46 : vector<8x1xf32>
    %126 = arith.addf %123, %125 : vector<8x1xf32>
    %127 = vector.extract_strided_slice %113 {offsets = [0, 4], sizes = [8, 1], strides = [1, 1]} : vector<8x5xf32> to vector<8x1xf32>
    %128 = arith.mulf %127, %57 : vector<8x1xf32>
    %129 = arith.addf %126, %128 : vector<8x1xf32>
    %c0_35 = arith.constant 0 : index
    %c0_36 = arith.constant 0 : index
    %130 = vector.load %arg5[%c0_35, %c0_36] : memref<1x1xf32, #tpu.memory_space<vmem>>, vector<1x1xf32>
    %131 = vector.broadcast %130 : vector<1x1xf32> to vector<8x1xf32>
    %132 = arith.addf %129, %131 : vector<8x1xf32>
    %c0_37 = arith.constant 0 : index
    %c0_38 = arith.constant 0 : index
    %133 = vector.load %arg6[%c0_37, %c0_38] : memref<8x1xf32, #tpu.memory_space<vmem>>, vector<8x1xf32>
    tpu.vector_store %arg6[%c0_37, %c0_38], %132 {strides = array<i32>} : memref<8x1xf32, #tpu.memory_space<vmem>>, vector<8x1xf32>,
    return
  }
  func.func @transform_0(%arg0: i32) -> (i32, i32, i32) {
    %c0_i32 = arith.constant 0 : i32
    %c0_i32_0 = arith.constant 0 : i32
    %c0_i32_1 = arith.constant 0 : i32
    return %c0_i32, %arg0, %c0_i32_0 : i32, i32, i32
  }
  func.func @transform_1(%arg0: i32) -> (i32, i32) {
    %c0_i32 = arith.constant 0 : i32
    %c0_i32_0 = arith.constant 0 : i32
    %c0_i32_1 = arith.constant 0 : i32
    return %c0_i32, %c0_i32_0 : i32, i32
  }
  func.func @transform_2(%arg0: i32) -> (i32, i32) {
    %c0_i32 = arith.constant 0 : i32
    %c0_i32_0 = arith.constant 0 : i32
    %c0_i32_1 = arith.constant 0 : i32
    return %c0_i32, %c0_i32_0 : i32, i32
  }
  func.func @transform_3(%arg0: i32) -> (i32, i32) {
    %c0_i32 = arith.constant 0 : i32
    %c0_i32_0 = arith.constant 0 : i32
    %c0_i32_1 = arith.constant 0 : i32
    return %c0_i32, %c0_i32_0 : i32, i32
  }
  func.func @transform_4(%arg0: i32) -> (i32, i32) {
    %c0_i32 = arith.constant 0 : i32
    %c0_i32_0 = arith.constant 0 : i32
    %c0_i32_1 = arith.constant 0 : i32
    return %c0_i32, %c0_i32_0 : i32, i32
  }
  func.func @transform_5(%arg0: i32) -> (i32, i32) {
    %c0_i32 = arith.constant 0 : i32
    %c0_i32_0 = arith.constant 0 : i32
    return %arg0, %c0_i32 : i32, i32
  }
}

</mosaic_0001>

<llo_original>
// kernel: tpu_custom_call.1
$region0: #{tpu_custom_call.1}
  #allocation0 [shape = 'u32[]', space=smem, size = 0x4, offset = 0x4, fixed_abs, tag = 'smem constant byte address 0x4 - core index']
  #allocation1 [shape = 'u32[144,128]{1,0:T(1,128)}', space=vmem, size = 0x12000, scoped, tag = 'internal scratch']
  #allocation2 [shape = 'f32[1,1]{1,0:T(1,128)S(1)}', space=vmem, size = 0x200, scoped, tag = 'scoped memory for tpu_custom_call.1']
  %s0 = inlined_call_operand.hbm [shape: f32[5,8,256], index: 0, kind: input, shape index: {}]
  %s1 = inlined_call_operand.vmem [shape: f32[5,3], index: 1, kind: input, shape index: {}]
  %s2 = inlined_call_operand.vmem [shape: f32[3,5], index: 2, kind: input, shape index: {}]
  %s3 = inlined_call_operand.vmem [shape: f32[5,256], index: 3, kind: input, shape index: {}]
  %s4 = inlined_call_operand.<no memory space> [shape: f32[1,1], index: 4, kind: input, shape index: {}]
  %s5 = inlined_call_operand.vmem [shape: f32[8,1], index: 5, kind: output, shape index: {}]
  %s6 = sld [smem:[#allocation0]]
  $region34: #{tpu_custom_call.1} parent=0
    _
  %s8 = ssub.s32 1, %s6
  %s9 = scalar_select 0, %s8, %s6
  %v10 = vstv %s4
  %11 = vst [vmem:[#allocation2] sm:$0x1] %v10
  $region1: #{tpu_custom_call.1} parent=0
    #allocation3 [shape = 'u8[40960]{0}', space=vmem, size = 0xa000, scoped, tag = 'input window, operand 0, single buffered']
    #allocation4 [shape = 's32[1]{0}', space=sflag, size = 0x4, scoped, tag = 'scoped memory for tpu_custom_call.1']
    %12 = vsyncpa [#allocation4], 0
    // Predicated region
    $region2: #{tpu_custom_call.1} parent=1 // pred_check
      _
    $region3: #{tpu_custom_call.1} parent=1 // pred_check_branch
      %14 = sbr.rel (0) target = $region5
    $region4: #{tpu_custom_call.1} parent=1 // pred_region
      %s16 = ssub.s32 1280, 1280
      %17 = vsyncadd [#allocation4], %s16
      %s18 = sshll.u32 [#allocation3], 4
      %s19 = int_to_ptr.vmem [resolvable:$true] %s18
      %24 = dma.hbm_to_vmem [thread:$0]  %s0, 1280, %s19, [#allocation4], 256, 256, 16
    $region5: #{tpu_custom_call.1} parent=1 // pred_fallthru
      _
    // Predicated region
    $region6: #{tpu_custom_call.1} parent=1 // pred_check
      _
    $region7: #{tpu_custom_call.1} parent=1 // pred_check_branch
      %26 = sbr.rel (0) target = $region9
    $region8: #{tpu_custom_call.1} parent=1 // pred_region
      _
    $region9: #{tpu_custom_call.1} parent=1 // pred_fallthru
      _
    // Predicated region
    $region10: #{tpu_custom_call.1} parent=1 // pred_check
      _
    $region11: #{tpu_custom_call.1} parent=1 // pred_check_branch
      %28 = sbr.rel (0) target = $region13
    $region12: #{tpu_custom_call.1} parent=1 // pred_region
      _
    $region13: #{tpu_custom_call.1} parent=1 // pred_fallthru
      _
    // Predicated region
    $region14: #{tpu_custom_call.1} parent=1 // pred_check
      _
    $region15: #{tpu_custom_call.1} parent=1 // pred_check_branch
      %30 = sbr.rel (0) target = $region17
    $region16: #{tpu_custom_call.1} parent=1 // pred_region
      _
    $region17: #{tpu_custom_call.1} parent=1 // pred_fallthru
      _
    // Predicated region
    $region18: #{tpu_custom_call.1} parent=1 // pred_check
      _
    $region19: #{tpu_custom_call.1} parent=1 // pred_check_branch
      %32 = sbr.rel (0) target = $region21
    $region20: #{tpu_custom_call.1} parent=1 // pred_region
      _
    $region21: #{tpu_custom_call.1} parent=1 // pred_fallthru
      _
    // Predicated region
    $region22: #{tpu_custom_call.1} parent=1 // pred_check
      _
    $region23: #{tpu_custom_call.1} parent=1 // pred_check_branch
      %34 = sbr.rel (0) target = $region25
    $region24: #{tpu_custom_call.1} parent=1 // pred_region
      %35 = dma.done [#allocation4], 1280
    $region25: #{tpu_custom_call.1} parent=1 // pred_fallthru
      _
    %v36 = vld [vmem:[%s1] sm:$0x1f]
    %v37 = vld [vmem:[%s2] sm:$0x7]
    %v38 = vld [vmem:[%s3] sm:$0x1f]
    %v39 = vld [vmem:[%s3 + $0x8] sm:$0x1f]
    %v40 = vld [vmem:[#allocation3] sm:$0xff]
    %v41 = vld [vmem:[#allocation3 + $0x8] sm:$0xff]
    %v42 = vadd.f32 %v40, %v41
    %43 = vadd.xlane.f32.xlu0 %v42
    %v44 = vpop.xlane.xlu0 %43
    %v45 = vmul.f32 %v44, 0.00390625
    %v46 = vlaneseq
    %v47 = vshrl.u32 %v46, 7
    %v48 = vsub.s32 0, %v47
    %v49 = vrot.slane %v38, %v48
    %v50 = vlaneseq
    %v51 = vshrl.u32 %v50, 7
    %v52 = vsub.s32 0, %v51
    %v53 = vrot.slane %v39, %v52
    %v54 = vmul.f32 %v40, %v49
    %v55 = vmul.f32 %v41, %v53
    %v56 = vadd.f32 %v54, %v55
    %57 = vadd.xlane.f32.xlu0 %v56
    %v58 = vpop.xlane.xlu0 %57
    %s59 = scalar_lea.vmem [#allocation3], 16
    %v60 = vld [vmem:[%s59] sm:$0xff]
    %v61 = vld [vmem:[%s59 + $0x8] sm:$0xff]
    %v62 = vadd.f32 %v60, %v61
    %63 = vadd.xlane.f32.xlu0 %v62
    %v64 = vpop.xlane.xlu0 %63
    %v65 = vmul.f32 %v64, 0.00390625
    %v66 = vlaneseq
    %v67 = vshrl.u32 %v66, 7
    %v68 = vsub.s32 1, %v67
    %v69 = vrot.slane %v38, %v68
    %v70 = vlaneseq
    %v71 = vshrl.u32 %v70, 7
    %v72 = vsub.s32 1, %v71
    %v73 = vrot.slane %v39, %v72
    %v74 = vmul.f32 %v60, %v69
    %v75 = vmul.f32 %v61, %v73
    %v76 = vadd.f32 %v74, %v75
    %77 = vadd.xlane.f32.xlu0 %v76
    %v78 = vpop.xlane.xlu0 %77
    %s79 = scalar_lea.vmem [#allocation3], 32
    %v80 = vld [vmem:[%s79] sm:$0xff]
    %v81 = vld [vmem:[%s79 + $0x8] sm:$0xff]
    %v82 = vadd.f32 %v80, %v81
    %83 = vadd.xlane.f32.xlu0 %v82
    %v84 = vpop.xlane.xlu0 %83
    %v85 = vmul.f32 %v84, 0.00390625
    %v86 = vlaneseq
    %v87 = vshrl.u32 %v86, 7
    %v88 = vsub.s32 2, %v87
    %v89 = vrot.slane %v38, %v88
    %v90 = vlaneseq
    %v91 = vshrl.u32 %v90, 7
    %v92 = vsub.s32 2, %v91
    %v93 = vrot.slane %v39, %v92
    %v94 = vmul.f32 %v80, %v89
    %v95 = vmul.f32 %v81, %v93
    %v96 = vadd.f32 %v94, %v95
    %97 = vadd.xlane.f32.xlu0 %v96
    %v98 = vpop.xlane.xlu0 %97
    %s99 = scalar_lea.vmem [#allocation3], 48
    %v100 = vld [vmem:[%s99] sm:$0xff]
    %v101 = vld [vmem:[%s99 + $0x8] sm:$0xff]
    %v102 = vadd.f32 %v100, %v101
    %103 = vadd.xlane.f32.xlu0 %v102
    %v104 = vpop.xlane.xlu0 %103
    %v105 = vmul.f32 %v104, 0.00390625
    %v106 = vlaneseq
    %v107 = vshrl.u32 %v106, 7
    %v108 = vsub.s32 3, %v107
    %v109 = vrot.slane %v38, %v108
    %v110 = vlaneseq
    %v111 = vshrl.u32 %v110, 7
    %v112 = vsub.s32 3, %v111
    %v113 = vrot.slane %v39, %v112
    %v114 = vmul.f32 %v100, %v109
    %v115 = vmul.f32 %v101, %v113
    %v116 = vadd.f32 %v114, %v115
    %117 = vadd.xlane.f32.xlu0 %v116
    %v118 = vpop.xlane.xlu0 %117
    %s119 = scalar_lea.vmem [#allocation3], 64
    %v120 = vld [vmem:[%s119] sm:$0xff]
    %v121 = vld [vmem:[%s119 + $0x8] sm:$0xff]
    %v122 = vadd.f32 %v120, %v121
    %123 = vadd.xlane.f32.xlu0 %v122
    %v124 = vpop.xlane.xlu0 %123
    %v125 = vmul.f32 %v124, 0.00390625
    %v126 = vlaneseq
    %v127 = vshrl.u32 %v126, 7
    %v128 = vsub.s32 4, %v127
    %v129 = vrot.slane %v38, %v128
    %v130 = vlaneseq
    %v131 = vshrl.u32 %v130, 7
    %v132 = vsub.s32 4, %v131
    %v133 = vrot.slane %v39, %v132
    %v134 = vmul.f32 %v120, %v129
    %v135 = vmul.f32 %v121, %v133
    %v136 = vadd.f32 %v134, %v135
    %137 = vadd.xlane.f32.xlu0 %v136
    %v138 = vpop.xlane.xlu0 %137
    %v139 = vlaneseq
    %v140 = vshrl.u32 %v139, 7
    %v141 = vsub.s32 0, %v140
    %v142 = vrot.slane %v36, %v141
    %v143 = vmul.f32 %v45, %v142
    %v144 = vadd.f32 %v143, 0.0
    %v145 = vlaneseq
    %v146 = vshrl.u32 %v145, 7
    %v147 = vsub.s32 1, %v146
    %v148 = vrot.slane %v36, %v147
    %v149 = vmul.f32 %v65, %v148
    %v150 = vadd.f32 %v144, %v149
    %v151 = vlaneseq
    %v152 = vshrl.u32 %v151, 7
    %v153 = vsub.s32 2, %v152
    %v154 = vrot.slane %v36, %v153
    %v155 = vmul.f32 %v85, %v154
    %v156 = vadd.f32 %v150, %v155
    %v157 = vlaneseq
    %v158 = vshrl.u32 %v157, 7
    %v159 = vsub.s32 3, %v158
    %v160 = vrot.slane %v36, %v159
    %v161 = vmul.f32 %v105, %v160
    %v162 = vadd.f32 %v156, %v161
    %v163 = vlaneseq
    %v164 = vshrl.u32 %v163, 7
    %v165 = vsub.s32 4, %v164
    %v166 = vrot.slane %v36, %v165
    %v167 = vmul.f32 %v125, %v166
    %v168 = vadd.f32 %v162, %v167
    %v169 = vxor.u32 %v168, 2147483648
    %v170 = vmul.f32 %v169, 1.442695
    %v171 = vpow.pop %v170
    %v172 = vadd.f32 %v171, 1.0
    %v173 = vrcp.pop %v172
    %v174 = vmul.f32 1.0, %v173
    %v175 = vmul.f32 %v168, %v174
    %177 = vset.pattern.permute.xlu0 0
    %178 = vperm.xlu0 %177, %v175
    %v179 = vpop.permute.xlu0 %178
    %v181 = vlaneseq
    %v182 = vshrl.u32 %v181, 7
    %v183 = vsub.s32 0, %v182
    %v184 = vrot.slane %v37, %v183
    %v185 = vmul.f32 %v179, %v184
    %v186 = vadd.f32 %v185, 0.0
    %187 = vset.pattern.permute.xlu0 1
    %188 = vperm.xlu0 %187, %v175
    %v189 = vpop.permute.xlu0 %188
    %v191 = vlaneseq
    %v192 = vshrl.u32 %v191, 7
    %v193 = vsub.s32 1, %v192
    %v194 = vrot.slane %v37, %v193
    %v195 = vmul.f32 %v189, %v194
    %v196 = vadd.f32 %v186, %v195
    %197 = vset.pattern.permute.xlu0 2
    %198 = vperm.xlu0 %197, %v175
    %v199 = vpop.permute.xlu0 %198
    %v201 = vlaneseq
    %v202 = vshrl.u32 %v201, 7
    %v203 = vsub.s32 2, %v202
    %v204 = vrot.slane %v37, %v203
    %v205 = vmul.f32 %v199, %v204
    %v206 = vadd.f32 %v196, %v205
    %v207 = vxor.u32 %v206, 2147483648
    %v208 = vmul.f32 %v207, 1.442695
    %v209 = vpow.pop %v208
    %v210 = vadd.f32 %v209, 1.0
    %v211 = vrcp.pop %v210
    %v212 = vmul.f32 1.0, %v211
    %v213 = vmul.f32 %v212, %v58
    %v214 = vadd.f32 %v213, 0.0
    %v215 = vmul.f32 %v212, %v78
    %217 = vrot.lane.b32.xlu0 %v215, 127
    %v218 = vpop.permute.xlu0 %217
    %v220 = vadd.f32 %v214, %v218
    %v221 = vmul.f32 %v212, %v98
    %223 = vrot.lane.b32.xlu0 %v221, 126
    %v224 = vpop.permute.xlu0 %223
    %v226 = vadd.f32 %v220, %v224
    %v227 = vmul.f32 %v212, %v118
    %229 = vrot.lane.b32.xlu0 %v227, 125
    %v230 = vpop.permute.xlu0 %229
    %v232 = vadd.f32 %v226, %v230
    %v233 = vmul.f32 %v212, %v138
    %235 = vrot.lane.b32.xlu0 %v233, 124
    %v236 = vpop.permute.xlu0 %235
    %v238 = vadd.f32 %v232, %v236
    %v239 = vld [vmem:[#allocation2] sm:$0x1]
    %v241 = vlaneseq
    %v242 = vshrl.u32 %v241, 7
    %v243 = vsub.s32 0, %v242
    %v244 = vrot.slane %v239, %v243
    %v246 = vadd.f32 %v238, %v244
    %vm247 = vcmask 7168
    %248 = vst.msk [vmem:[%s5] sm:$0xff] %vm247, %v246
    // Predicated region
    $region26: #{tpu_custom_call.1} parent=1 // pred_check
      _
    $region27: #{tpu_custom_call.1} parent=1 // pred_check_branch
      %250 = sbr.rel (0) target = $region29
    $region28: #{tpu_custom_call.1} parent=1 // pred_region
      _
    $region29: #{tpu_custom_call.1} parent=1 // pred_fallthru
      _
    // Predicated region
    $region30: #{tpu_custom_call.1} parent=1 // pred_check
      _
    $region31: #{tpu_custom_call.1} parent=1 // pred_check_branch
      %252 = sbr.rel (0) target = $region33
    $region32: #{tpu_custom_call.1} parent=1 // pred_region
      _
    $region33: #{tpu_custom_call.1} parent=1 // pred_fallthru
      _
    %253 = vsyncpa [#allocation4], 1

</llo_original>
